<compile_context>
chip_gen: v7x
topology: tpu7x:2x2x1
jax: 0.10.0
libtpu: 0.0.40
codegen_flags: <defaults>
</compile_context>

<pallas_src>
import functools
import math

import jax
import jax.numpy as jnp
import numpy as np
from jax.experimental import pallas as pl
from jax.experimental.pallas import tpu as pltpu

EPS = 1e-5
# Above the 16/32 MiB scoped defaults (review item), still safe on v7x's 64 MiB physical VMEM.
VMEM_LIMIT_BYTES = 48 * 1024 * 1024


def _pick_tile(dim, pref, align):
    """Largest tile <= pref that divides dim and is a multiple of `align`;
    falls back to the full dim (a full-extent block is always legal)."""
    if dim <= pref:
        return dim
    t = (pref // align) * align
    while t >= align:
        if dim % t == 0:
            return t
        t -= align
    return dim


# ---------- in-kernel exact-GELU helper ----------
# erf via Abramowitz-Stegun 7.1.26 (|abs err| < 1.5e-7); only mul/add/div/exp -> safe Mosaic ops.
def _erf(x):
    p = 0.3275911
    a1, a2, a3, a4, a5 = 0.254829592, -0.284496736, 1.421413741, -1.453152027, 1.061405429
    ax = jnp.abs(x)
    t = 1.0 / (1.0 + p * ax)
    poly = t * (a1 + t * (a2 + t * (a3 + t * (a4 + t * a5))))
    y = 1.0 - poly * jnp.exp(-ax * ax)
    return jnp.where(x >= 0, y, -y)


def _gelu_exact(x):
    return 0.5 * x * (1.0 + _erf(x * 0.7071067811865476))


# ---------- kernels ----------
def ln_linear_kernel(x_ref, g_ref, beta_ref, w_ref, b_ref, o_ref, *, activation):
    """LayerNorm prologue (f32) fused into a matmul tile; optional exact-GELU epilogue."""
    x = x_ref[...].astype(jnp.float32)
    mu = jnp.mean(x, axis=-1, keepdims=True)
    xc = x - mu
    var = jnp.mean(xc * xc, axis=-1, keepdims=True)
    xn = xc * jax.lax.rsqrt(var + EPS) * g_ref[...] + beta_ref[...]
    y = jnp.dot(xn.astype(w_ref.dtype), w_ref[...],
                preferred_element_type=jnp.float32) + b_ref[...]
    if activation == "gelu":
        y = _gelu_exact(y)
    o_ref[...] = y.astype(o_ref.dtype)


def matmul_residual_kernel(x_ref, w_ref, b_ref, r_ref, o_ref, acc_ref):
    """K-tiled MXU matmul, f32 VMEM accumulator; bias + residual-add fused in the epilogue."""
    k = pl.program_id(2)

    @pl.when(k == 0)
    def _init():
        acc_ref[...] = jnp.zeros_like(acc_ref)

    acc_ref[...] += jnp.dot(x_ref[...], w_ref[...], preferred_element_type=jnp.float32)

    @pl.when(k == pl.num_programs(2) - 1)
    def _finalize():
        o_ref[...] = (acc_ref[...] + b_ref[...] + r_ref[...]).astype(o_ref.dtype)


def attention_kernel(q_ref, kv_ref, bias_ref, o_ref, *, num_heads, hidden, d):
    """One (batch, query-tile) step of the heads-axis-softmax attention.

    q_ref  : (tq, 3H) rows of this query tile (q scaling already folded into the weights)
    kv_ref : (S , 3H) all rows of this batch element (only the k/v column slices are used)
    bias   : (1, tq, S) precomputed (1-mask)*(-10000), f32
    o_ref  : (tq, H) merged-head context, written back directly in the (tokens, H) layout
    """
    H = hidden
    qblk = q_ref[...]
    kvblk = kv_ref[...]
    bias = bias_ref[0]  # (tq, S) f32

    # Per-head scores (static Python loop; heads must stay coupled because torch's
    # nn.Softmax() with dim=None normalizes over the heads axis of the 4-D score tensor).
    scores = []
    for h in range(num_heads):
        qh = qblk[:, h * d:(h + 1) * d]
        kh = kvblk[:, H + h * d:H + (h + 1) * d]
        s = jax.lax.dot_general(qh, kh, (((1,), (1,)), ((), ())),
                                preferred_element_type=jnp.float32)
        scores.append(s + bias)

    m = scores[0]
    for h in range(1, num_heads):
        m = jnp.maximum(m, scores[h])
    exps = [jnp.exp(s - m) for s in scores]
    den = exps[0]
    for h in range(1, num_heads):
        den = den + exps[h]
    inv = 1.0 / den

    for h in range(num_heads):
        vh = kvblk[:, 2 * H + h * d:2 * H + (h + 1) * d]
        p = (exps[h] * inv).astype(vh.dtype)
        ctx = jnp.dot(p, vh, preferred_element_type=jnp.float32)
        o_ref[:, h * d:(h + 1) * d] = ctx.astype(o_ref.dtype)
    # TODO(synk): attention-prob dropout is random at train time; identity (eval) here.


# ---------- pallas_call wrappers ----------
def ln_linear(x, g, beta, w, b, *, activation=None, out_dtype=jnp.float32,
              tm_pref=256, tn_pref=256):
    M, K = x.shape
    N = w.shape[1]
    tm = _pick_tile(M, tm_pref, 8)
    tn = _pick_tile(N, tn_pref, 128)
    kernel = functools.partial(ln_linear_kernel, activation=activation)
    return pl.pallas_call(
        kernel,
        out_shape=jax.ShapeDtypeStruct((M, N), out_dtype),
        grid=(M // tm, N // tn),
        in_specs=[
            pl.BlockSpec((tm, K), lambda i, j: (i, 0)),
            pl.BlockSpec((1, K), lambda i, j: (0, 0)),
            pl.BlockSpec((1, K), lambda i, j: (0, 0)),
            pl.BlockSpec((K, tn), lambda i, j: (0, j)),
            pl.BlockSpec((1, tn), lambda i, j: (0, j)),
        ],
        out_specs=pl.BlockSpec((tm, tn), lambda i, j: (i, j)),
        compiler_params=pltpu.CompilerParams(
            dimension_semantics=("parallel", "parallel"),
            vmem_limit_bytes=VMEM_LIMIT_BYTES),
        cost_estimate=pl.CostEstimate(
            flops=2 * M * N * K + 10 * M * K,
            transcendentals=(M * N) if activation == "gelu" else 0,
            bytes_accessed=(M * K + K * N + M * N) * 4),
    )(x, g, beta, w, b)


def matmul_residual(x, w, b, resid, *, tm_pref=256, tn_pref=256, tk_pref=512):
    M, K = x.shape
    N = w.shape[1]
    tm = _pick_tile(M, tm_pref, 8)
    tn = _pick_tile(N, tn_pref, 128)
    tk = _pick_tile(K, tk_pref, 128)
    return pl.pallas_call(
        matmul_residual_kernel,
        out_shape=jax.ShapeDtypeStruct((M, N), jnp.float32),
        grid=(M // tm, N // tn, K // tk),
        in_specs=[
            pl.BlockSpec((tm, tk), lambda i, j, k: (i, k)),
            pl.BlockSpec((tk, tn), lambda i, j, k: (k, j)),
            pl.BlockSpec((1, tn), lambda i, j, k: (0, j)),
            pl.BlockSpec((tm, tn), lambda i, j, k: (i, j)),
        ],
        out_specs=pl.BlockSpec((tm, tn), lambda i, j, k: (i, j)),
        scratch_shapes=[pltpu.VMEM((tm, tn), jnp.float32)],
        compiler_params=pltpu.CompilerParams(
            dimension_semantics=("parallel", "parallel", "arbitrary"),
            vmem_limit_bytes=VMEM_LIMIT_BYTES),
        cost_estimate=pl.CostEstimate(
            flops=2 * M * N * K,
            transcendentals=0,
            bytes_accessed=(M * K + K * N + 2 * M * N) * 4),
    )(x, w, b, resid)


def attention_core(qkv, mask_bias, *, batch, seq_len, hidden, num_heads,
                   out_dtype=jnp.float32, tq_pref=128):
    B, S, H = batch, seq_len, hidden
    d = H // num_heads
    three_h = qkv.shape[1]
    tq = _pick_tile(S, tq_pref, 8)
    nq = S // tq
    kernel = functools.partial(attention_kernel, num_heads=num_heads, hidden=H, d=d)
    return pl.pallas_call(
        kernel,
        out_shape=jax.ShapeDtypeStruct((B * S, H), out_dtype),
        grid=(B, nq),
        in_specs=[
            # query rows of this tile
            pl.BlockSpec((tq, three_h), lambda b, q: (b * nq + q, 0)),
            # full (S, 3H) rows of this batch element (k/v); block index constant over q
            pl.BlockSpec((S, three_h), lambda b, q: (b, 0)),
            pl.BlockSpec((1, tq, S), lambda b, q: (b, q, 0)),
        ],
        out_specs=pl.BlockSpec((tq, H), lambda b, q: (b * nq + q, 0)),
        compiler_params=pltpu.CompilerParams(
            dimension_semantics=("parallel", "arbitrary"),
            vmem_limit_bytes=VMEM_LIMIT_BYTES),
        cost_estimate=pl.CostEstimate(
            flops=4 * B * num_heads * S * S * d,
            transcendentals=B * num_heads * S * S,
            bytes_accessed=(B * S * 3 * H + B * S * S + B * S * H) * 4),
    )(qkv, qkv, mask_bias)


# ---------- full layer ----------
def transformer_encoder_layer(x, input_mask, params, num_heads,
                              compute_dtype=jnp.float32):
    B, S, H = x.shape
    assert H % num_heads == 0
    d = H // num_heads
    cd = compute_dtype
    x2d = x.reshape(B * S, H).astype(jnp.float32)

    # Fold the q/k scaling (both divided by sqrt(sqrt(d))) into the q slice only:
    # (q/f)@(k/f)^T == (q/f^2)@k^T with f^2 = sqrt(d).  k/v stay unscaled so the returned
    # layer_present matches torch exactly.
    inv_sqrt_d = 1.0 / math.sqrt(d)
    wqkv = jnp.concatenate(
        [params["wq"] * inv_sqrt_d, params["wk"], params["wv"]], axis=1).astype(cd)
    bqkv = jnp.concatenate(
        [params["bq"] * inv_sqrt_d, params["bk"], params["bv"]], axis=1)

    # 1) LN1 fused into the QKV projection; lane-dense (tokens, 3H) output in compute dtype.
    qkv = ln_linear(x2d, params["ln1_g"], params["ln1_b"], wqkv, bqkv,
                    activation=None, out_dtype=cd)

    # layer_present in the exact torch layouts: key (B, nh, d, S), value (B, nh, S, d).
    k2 = qkv[:, H:2 * H].astype(jnp.float32)
    v2 = qkv[:, 2 * H:3 * H].astype(jnp.float32)
    key_present = k2.reshape(B, S, num_heads, d).transpose(0, 2, 3, 1)
    value_present = v2.reshape(B, S, num_heads, d).transpose(0, 2, 1, 3)
    layer_present = (key_present, value_present)

    # Precompute the additive attention-mask bias once in the wrapper.
    mask_bias = (1.0 - input_mask.astype(jnp.float32)) * (-10000.0)  # (B, S, S)

    # 2) attention core (heads-axis softmax, torch nn.Softmax() implicit dim=1); the merged
    #    context comes back directly in the (tokens, H) layout -- no HBM head transposes.
    attn_ctx = attention_core(qkv, mask_bias, batch=B, seq_len=S, hidden=H,
                              num_heads=num_heads, out_dtype=cd)

    # 3) output projection + residual(x) fused into the matmul epilogue.
    x_res = matmul_residual(attn_ctx, params["wo"].astype(cd), params["bo"], x2d)
    # TODO(synk): hidden-dropout after the projection is random at train time; identity here.

    # 4) LN2 fused into the FFN mapping with the exact-GELU epilogue.
    hidden_act = ln_linear(x_res, params["ln2_g"], params["ln2_b"],
                           params["wm"].astype(cd), params["bm"],
                           activation="gelu", out_dtype=cd)

    # 5) FFN projection + residual(x_res) fused.
    out2d = matmul_residual(hidden_act, params["wp"].astype(cd), params["bp"], x_res)

    return out2d.reshape(B, S, H), layer_present


# ---------- deterministic parameter init ----------
def init_params(key, hidden, ffn_hidden):
    ks = jax.random.split(key, 16)

    def w(k, shape, s=0.05):
        return (s * jax.random.normal(k, shape)).astype(jnp.float32)

    return dict(
        ln1_g=(1.0 + 0.01 * jax.random.normal(ks[0], (1, hidden))).astype(jnp.float32),
        ln1_b=w(ks[1], (1, hidden), 0.01),
        wq=w(ks[2], (hidden, hidden)), bq=w(ks[3], (1, hidden), 0.01),
        wk=w(ks[4], (hidden, hidden)), bk=w(ks[5], (1, hidden), 0.01),
        wv=w(ks[6], (hidden, hidden)), bv=w(ks[7], (1, hidden), 0.01),
        wo=w(ks[8], (hidden, hidden)), bo=w(ks[9], (1, hidden), 0.01),
        ln2_g=(1.0 + 0.01 * jax.random.normal(ks[10], (1, hidden))).astype(jnp.float32),
        ln2_b=w(ks[11], (1, hidden), 0.01),
        wm=w(ks[12], (hidden, ffn_hidden)), bm=w(ks[13], (1, ffn_hidden), 0.01),
        wp=w(ks[14], (ffn_hidden, hidden)), bp=w(ks[15], (1, hidden), 0.01),
    )


# ---------- pure-JAX reference (mirrors the torch module, f32) ----------
def reference(x, mask, p, nh):
    B, S, H = x.shape
    d = H // nh
    x2 = x.reshape(-1, H).astype(jnp.float32)

    def ln(y, g, b):
        mu = y.mean(-1, keepdims=True)
        var = ((y - mu) ** 2).mean(-1, keepdims=True)
        return (y - mu) / jnp.sqrt(var + EPS) * g + b

    ix = ln(x2, p["ln1_g"], p["ln1_b"])
    q = (ix @ p["wq"] + p["bq"]).reshape(B, S, nh, d).transpose(0, 2, 1, 3)
    k = (ix @ p["wk"] + p["bk"]).reshape(B, S, nh, d).transpose(0, 2, 3, 1)
    v = (ix @ p["wv"] + p["bv"]).reshape(B, S, nh, d).transpose(0, 2, 1, 3)
    scale = 1.0 / math.sqrt(math.sqrt(d))
    score = jnp.einsum("bhsd,bhdt->bhst", q * scale, k * scale)
    score = score + (1.0 - mask[:, None, :, :]) * (-10000.0)
    probs = jax.nn.softmax(score, axis=1)  # torch nn.Softmax() implicit dim=1 on a 4-D tensor
    ctx = jnp.einsum("bhst,bhtd->bhsd", probs, v)
    merged = ctx.transpose(0, 2, 1, 3).reshape(-1, H)
    xr = x2 + (merged @ p["wo"] + p["bo"])
    o2 = ln(xr, p["ln2_g"], p["ln2_b"])
    hid = jax.nn.gelu(o2 @ p["wm"] + p["bm"], approximate=False)
    out = (xr + (hid @ p["wp"] + p["bp"])).reshape(B, S, H)
    return out, (k, v)


if __name__ == "__main__":
    def run_case(B, S, H, NH, FFN, compute_dtype, rtol, atol):
        key = jax.random.PRNGKey(0)
        kx, kp = jax.random.split(key)
        x = jax.random.normal(kx, (B, S, H), dtype=jnp.float32)
        input_mask = jnp.tile(jnp.tril(jnp.ones((S, S), jnp.float32))[None], (B, 1, 1))
        params = init_params(kp, H, FFN)

        out, (k_pres, v_pres) = transformer_encoder_layer(
            x, input_mask, params, NH, compute_dtype=compute_dtype)
        jax.block_until_ready(out)

        ref_out, (ref_k, ref_v) = reference(x, input_mask, params, NH)
        np.testing.assert_allclose(np.asarray(out), np.asarray(ref_out), rtol=rtol, atol=atol)
        np.testing.assert_allclose(np.asarray(k_pres), np.asarray(ref_k), rtol=rtol, atol=atol)
        np.testing.assert_allclose(np.asarray(v_pres), np.asarray(ref_v), rtol=rtol, atol=atol)

    # Small shapes implied by the module; f32 compute matches torch compute_dtype=float32.
    run_case(B=2, S=8, H=32, NH=2, FFN=64,
             compute_dtype=jnp.float32, rtol=5e-3, atol=5e-3)
    # Larger shapes: exercises multi-block grids, K-axis accumulation, query tiling and the
    # bf16-MXU path (looser tolerance vs. the f32 reference since operands are bf16).
    run_case(B=2, S=256, H=256, NH=4, FFN=1024,
             compute_dtype=jnp.bfloat16, rtol=3e-2, atol=6e-2)

    print("KERNEL_OK")
</pallas_src>

<mosaic_0001>
module attributes {stable_mosaic.version = 11 : i64} {
  func.func @ln_linear_kernel(%arg0: i32, %arg1: i32, %arg2: memref<16x32xf32, #tpu.memory_space<vmem>>, %arg3: memref<1x32xf32, #tpu.memory_space<vmem>>, %arg4: memref<1x32xf32, #tpu.memory_space<vmem>>, %arg5: memref<32x96xf32, #tpu.memory_space<vmem>>, %arg6: memref<1x96xf32, #tpu.memory_space<vmem>>, %arg7: memref<16x96xf32, #tpu.memory_space<vmem>>) attributes {dimension_semantics = [#tpu.dimension_semantics<parallel>, #tpu.dimension_semantics<parallel>], iteration_bounds = array<i64: 1, 1>, scalar_prefetch = 0 : i64, scratch_operands = 0 : i64, tpu.core_type = #tpu.core_type<tc>, window_params = [{transform_indices = @transform_0, window_bounds = array<i64: 16, 32>}, {pipeline_mode = #tpu.pipeline_mode<synchronous>, transform_indices = @transform_1, window_bounds = array<i64: 1, 32>}, {pipeline_mode = #tpu.pipeline_mode<synchronous>, transform_indices = @transform_2, window_bounds = array<i64: 1, 32>}, {transform_indices = @transform_3, window_bounds = array<i64: 32, 96>}, {transform_indices = @transform_4, window_bounds = array<i64: 1, 96>}, {transform_indices = @transform_5, window_bounds = array<i64: 16, 96>}]} {
    %c0 = arith.constant 0 : index
    %c0_0 = arith.constant 0 : index
    %0 = vector.load %arg2[%c0, %c0_0] : memref<16x32xf32, #tpu.memory_space<vmem>>, vector<16x32xf32>
    %cst = arith.constant dense<0.000000e+00> : vector<16xf32>
    %1 = vector.multi_reduction <add>, %0, %cst [1] : vector<16x32xf32> to vector<16xf32>
    %2 = vector.shape_cast %1 : vector<16xf32> to vector<16x1xf32>
    %cst_1 = arith.constant 3.200000e+01 : f32
    %3 = vector.broadcast %cst_1 : f32 to vector<16x1xf32>
    %4 = arith.divf %2, %3 : vector<16x1xf32>
    %5 = vector.broadcast %4 : vector<16x1xf32> to vector<16x32xf32>
    %6 = arith.subf %0, %5 : vector<16x32xf32>
    %7 = arith.mulf %6, %6 : vector<16x32xf32>
    %cst_2 = arith.constant dense<0.000000e+00> : vector<16xf32>
    %8 = vector.multi_reduction <add>, %7, %cst_2 [1] : vector<16x32xf32> to vector<16xf32>
    %9 = vector.shape_cast %8 : vector<16xf32> to vector<16x1xf32>
    %cst_3 = arith.constant 3.200000e+01 : f32
    %10 = vector.broadcast %cst_3 : f32 to vector<16x1xf32>
    %11 = arith.divf %9, %10 : vector<16x1xf32>
    %cst_4 = arith.constant 9.99999974E-6 : f32
    %12 = vector.broadcast %cst_4 : f32 to vector<16x1xf32>
    %13 = arith.addf %11, %12 : vector<16x1xf32>
    %14 = math.rsqrt %13 : vector<16x1xf32>
    %15 = vector.broadcast %14 : vector<16x1xf32> to vector<16x32xf32>
    %16 = arith.mulf %6, %15 : vector<16x32xf32>
    %c0_5 = arith.constant 0 : index
    %c0_6 = arith.constant 0 : index
    %17 = vector.load %arg3[%c0_5, %c0_6] : memref<1x32xf32, #tpu.memory_space<vmem>>, vector<1x32xf32>
    %18 = vector.broadcast %17 : vector<1x32xf32> to vector<16x32xf32>
    %19 = arith.mulf %16, %18 : vector<16x32xf32>
    %c0_7 = arith.constant 0 : index
    %c0_8 = arith.constant 0 : index
    %20 = vector.load %arg4[%c0_7, %c0_8] : memref<1x32xf32, #tpu.memory_space<vmem>>, vector<1x32xf32>
    %21 = vector.broadcast %20 : vector<1x32xf32> to vector<16x32xf32>
    %22 = arith.addf %19, %21 : vector<16x32xf32>
    %c0_9 = arith.constant 0 : index
    %c0_10 = arith.constant 0 : index
    %23 = vector.load %arg5[%c0_9, %c0_10] : memref<32x96xf32, #tpu.memory_space<vmem>>, vector<32x96xf32>
    %cst_11 = arith.constant dense<0.000000e+00> : vector<16x96xf32>
    %24 = tpu.matmul %22, %23, %cst_11 {dimension_numbers = #tpu.dot_dimension_numbers<[1], [0], [0], [1], [0, 0, 1, 1], [], []>} : vector<16x32xf32>, vector<32x96xf32>, vector<16x96xf32> -> vector<16x96xf32>
    %c0_12 = arith.constant 0 : index
    %c0_13 = arith.constant 0 : index
    %25 = vector.load %arg6[%c0_12, %c0_13] : memref<1x96xf32, #tpu.memory_space<vmem>>, vector<1x96xf32>
    %26 = vector.broadcast %25 : vector<1x96xf32> to vector<16x96xf32>
    %27 = arith.addf %24, %26 : vector<16x96xf32>
    %c0_14 = arith.constant 0 : index
    %c0_15 = arith.constant 0 : index
    %28 = vector.load %arg7[%c0_14, %c0_15] : memref<16x96xf32, #tpu.memory_space<vmem>>, vector<16x96xf32>
    tpu.vector_store %arg7[%c0_14, %c0_15], %27 {strides = array<i32>} : memref<16x96xf32, #tpu.memory_space<vmem>>, vector<16x96xf32>,
    return
  }
  func.func @transform_0(%arg0: i32, %arg1: i32) -> (i32, i32) {
    %c0_i32 = arith.constant 0 : i32
    %c0_i32_0 = arith.constant 0 : i32
    return %arg0, %c0_i32 : i32, i32
  }
  func.func @transform_1(%arg0: i32, %arg1: i32) -> (i32, i32) {
    %c0_i32 = arith.constant 0 : i32
    %c0_i32_0 = arith.constant 0 : i32
    %c0_i32_1 = arith.constant 0 : i32
    return %c0_i32, %c0_i32_0 : i32, i32
  }
  func.func @transform_2(%arg0: i32, %arg1: i32) -> (i32, i32) {
    %c0_i32 = arith.constant 0 : i32
    %c0_i32_0 = arith.constant 0 : i32
    %c0_i32_1 = arith.constant 0 : i32
    return %c0_i32, %c0_i32_0 : i32, i32
  }
  func.func @transform_3(%arg0: i32, %arg1: i32) -> (i32, i32) {
    %c0_i32 = arith.constant 0 : i32
    %c0_i32_0 = arith.constant 0 : i32
    return %c0_i32, %arg1 : i32, i32
  }
  func.func @transform_4(%arg0: i32, %arg1: i32) -> (i32, i32) {
    %c0_i32 = arith.constant 0 : i32
    %c0_i32_0 = arith.constant 0 : i32
    return %c0_i32, %arg1 : i32, i32
  }
  func.func @transform_5(%arg0: i32, %arg1: i32) -> (i32, i32) {
    %c0_i32 = arith.constant 0 : i32
    return %arg0, %arg1 : i32, i32
  }
}

</mosaic_0001>

<llo_original>
// kernel: tpu_custom_call.1
$region0: #{tpu_custom_call.1}
  #allocation0 [shape = 'u32[]', space=smem, size = 0x4, offset = 0x4, fixed_abs, tag = 'smem constant byte address 0x4 - core index']
  #allocation1 [shape = 'u32[144,128]{1,0:T(1,128)}', space=vmem, size = 0x12000, scoped, tag = 'internal scratch']
  %s0 = inlined_call_operand.hbm [shape: f32[16,32], index: 0, kind: input, shape index: {}]
  %s1 = inlined_call_operand.vmem [shape: f32[1,32], index: 1, kind: input, shape index: {}]
  %s2 = inlined_call_operand.vmem [shape: f32[1,32], index: 2, kind: input, shape index: {}]
  %s3 = inlined_call_operand.hbm [shape: f32[32,96], index: 3, kind: input, shape index: {}]
  %s4 = inlined_call_operand.vmem [shape: f32[1,96], index: 4, kind: input, shape index: {}]
  %s5 = inlined_call_operand.hbm [shape: f32[16,96], index: 5, kind: output, shape index: {}]
  %s6 = sld [smem:[#allocation0]]
  $region38: #{tpu_custom_call.1} parent=0
    _
  %s8 = ssub.s32 1, %s6
  %s9 = scalar_select 0, %s8, %s6
  $region1: #{tpu_custom_call.1} parent=0
    #allocation2 [shape = 'u8[8192]{0}', space=vmem, size = 0x2000, scoped, tag = 'input window, operand 0, single buffered']
    #allocation3 [shape = 's32[1]{0}', space=sflag, size = 0x4, scoped, tag = 'scoped memory for tpu_custom_call.1']
    #allocation4 [shape = 's32[1]{0}', space=sflag, size = 0x4, scoped, tag = 'scoped memory for tpu_custom_call.1']
    #allocation5 [shape = 'u8[16384]{0}', space=vmem, size = 0x4000, scoped, tag = 'input window, operand 3, single buffered']
    #allocation6 [shape = 's32[1]{0}', space=sflag, size = 0x4, scoped, tag = 'scoped memory for tpu_custom_call.1']
    #allocation7 [shape = 'u8[8192]{0}', space=vmem, size = 0x2000, scoped, tag = 'output window, operand 0, single buffered']
    %10 = vsyncpa [#allocation3], 0
    %11 = vsyncpa [#allocation6], 0
    %12 = vsyncpa [#allocation4], 0
    // Predicated region
    $region2: #{tpu_custom_call.1} parent=1 // pred_check
      _
    $region3: #{tpu_custom_call.1} parent=1 // pred_check_branch
      %14 = sbr.rel (0) target = $region5
    $region4: #{tpu_custom_call.1} parent=1 // pred_region
      %s16 = ssub.s32 256, 256
      %17 = vsyncadd [#allocation3], %s16
      %s18 = sshll.u32 [#allocation2], 4
      %s19 = int_to_ptr.vmem [resolvable:$true] %s18
      %24 = dma.hbm_to_vmem [thread:$0]  %s0, 256, %s19, [#allocation3], 128, 128, 8
    $region5: #{tpu_custom_call.1} parent=1 // pred_fallthru
      _
    // Predicated region
    $region6: #{tpu_custom_call.1} parent=1 // pred_check
      _
    $region7: #{tpu_custom_call.1} parent=1 // pred_check_branch
      %26 = sbr.rel (0) target = $region9
    $region8: #{tpu_custom_call.1} parent=1 // pred_region
      _
    $region9: #{tpu_custom_call.1} parent=1 // pred_fallthru
      _
    // Predicated region
    $region10: #{tpu_custom_call.1} parent=1 // pred_check
      _
    $region11: #{tpu_custom_call.1} parent=1 // pred_check_branch
      %28 = sbr.rel (0) target = $region13
    $region12: #{tpu_custom_call.1} parent=1 // pred_region
      _
    $region13: #{tpu_custom_call.1} parent=1 // pred_fallthru
      _
    // Predicated region
    $region14: #{tpu_custom_call.1} parent=1 // pred_check
      _
    $region15: #{tpu_custom_call.1} parent=1 // pred_check_branch
      %30 = sbr.rel (0) target = $region17
    $region16: #{tpu_custom_call.1} parent=1 // pred_region
      %s32 = ssub.s32 512, 512
      %33 = vsyncadd [#allocation6], %s32
      %s34 = sshll.u32 [#allocation5], 4
      %s35 = int_to_ptr.vmem [resolvable:$true] %s34
      %40 = dma.hbm_to_vmem [thread:$0]  %s3, 512, %s35, [#allocation6], 128, 128, 8
    $region17: #{tpu_custom_call.1} parent=1 // pred_fallthru
      _
    // Predicated region
    $region18: #{tpu_custom_call.1} parent=1 // pred_check
      _
    $region19: #{tpu_custom_call.1} parent=1 // pred_check_branch
      %42 = sbr.rel (0) target = $region21
    $region20: #{tpu_custom_call.1} parent=1 // pred_region
      _
    $region21: #{tpu_custom_call.1} parent=1 // pred_fallthru
      _
    // Predicated region
    $region22: #{tpu_custom_call.1} parent=1 // pred_check
      _
    $region23: #{tpu_custom_call.1} parent=1 // pred_check_branch
      %44 = sbr.rel (0) target = $region25
    $region24: #{tpu_custom_call.1} parent=1 // pred_region
      %45 = dma.done [#allocation3], 256
    $region25: #{tpu_custom_call.1} parent=1 // pred_fallthru
      _
    // Predicated region
    $region26: #{tpu_custom_call.1} parent=1 // pred_check
      _
    $region27: #{tpu_custom_call.1} parent=1 // pred_check_branch
      %47 = sbr.rel (0) target = $region29
    $region28: #{tpu_custom_call.1} parent=1 // pred_region
      %48 = dma.done [#allocation6], 512
    $region29: #{tpu_custom_call.1} parent=1 // pred_fallthru
      _
    %v49 = vld [vmem:[#allocation2] sm:$0xff]
    %v50 = vld [vmem:[#allocation2 + $0x8] sm:$0xff]
    %vm51 = vcmask 261120
    %v52 = vsel %vm51, %v49, 0.0
    %53 = vadd.xlane.f32.xlu0 %v52
    %v54 = vpop.xlane.xlu0 %53
    %v55 = vsel %vm51, %v50, 0.0
    %56 = vadd.xlane.f32.xlu0 %v55
    %v57 = vpop.xlane.xlu0 %56
    %v58 = vrcp.pop 32.0
    %v59 = vmul.f32 %v54, %v58
    %v60 = vmul.f32 %v57, %v58
    %v61 = vsub.f32 %v49, %v59
    %v62 = vsub.f32 %v50, %v60
    %v63 = vmul.f32 %v61, %v61
    %v64 = vmul.f32 %v62, %v62
    %v65 = vsel %vm51, %v63, 0.0
    %66 = vadd.xlane.f32.xlu0 %v65
    %v67 = vpop.xlane.xlu0 %66
    %v68 = vsel %vm51, %v64, 0.0
    %69 = vadd.xlane.f32.xlu0 %v68
    %v70 = vpop.xlane.xlu0 %69
    %v71 = vmul.f32 %v67, %v58
    %v72 = vmul.f32 %v70, %v58
    %v73 = vadd.f32 %v71, 1e-05
    %v74 = vadd.f32 %v72, 1e-05
    %v75 = vrsqrt.pop %v73
    %v76 = vrsqrt.pop %v74
    %v77 = vmul.f32 %v61, %v75
    %v78 = vmul.f32 %v62, %v76
    %v79 = vld [vmem:[%s1] sm:$0x1]
    %v81 = vlaneseq
    %v82 = vshrl.u32 %v81, 7
    %v83 = vsub.s32 0, %v82
    %v84 = vrot.slane %v79, %v83
    %v86 = vmul.f32 %v77, %v84
    %v87 = vmul.f32 %v78, %v84
    %v88 = vld [vmem:[%s2] sm:$0x1]
    %v90 = vlaneseq
    %v91 = vshrl.u32 %v90, 7
    %v92 = vsub.s32 0, %v91
    %v93 = vrot.slane %v88, %v92
    %v95 = vadd.f32 %v86, %v93
    %v96 = vadd.f32 %v87, %v93
    %v97 = vld [vmem:[#allocation5] sm:$0xff]
    %v98 = vld [vmem:[#allocation5 + $0x8] sm:$0xff]
    %v99 = vld [vmem:[#allocation5 + $0x10] sm:$0xff]
    %v100 = vld [vmem:[#allocation5 + $0x18] sm:$0xff]
    %v101 = vld [vmem:[%s4] sm:$0x1]
    %v103 = vlaneseq
    %v104 = vshrl.u32 %v103, 7
    %v105 = vsub.s32 0, %v104
    %v106 = vrot.slane %v101, %v105
    %v109 = vsel %vm51, %v95, 0
    %v112 = vsel %vm51, %v96, 0
    %114 = vmatprep.subr.mxu0 0.0
    %115 = vmatpush1.msra.mxu0 %v97
    %116 = vmatprep.subr.mxu0 0.0
    %117 = vmatpush1.msra.mxu0 %v98
    %118 = vmatprep.subr.mxu0 0.0
    %119 = vmatpush1.msra.mxu0 %v99
    %120 = vmatprep.subr.mxu0 0.0
    %121 = vmatpush1.msra.mxu0 %v100
    %122 = vmatprep.subr.mxu0 0.0
    %123 = vmatpush1.msra.mxu0 0.0
    %124 = vmatprep.subr.mxu0 0.0
    %125 = vmatpush1.msra.mxu0 0.0
    %126 = vmatprep.subr.mxu0 0.0
    %127 = vmatpush1.msra.mxu0 0.0
    %128 = vmatprep.subr.mxu0 0.0
    %129 = vmatpush1.msra.mxu0 0.0
    %130 = vmatprep.subr.mxu0 0.0
    %131 = vmatpush1.msra.mxu0 0.0
    %132 = vmatprep.subr.mxu0 0.0
    %133 = vmatpush1.msra.mxu0 0.0
    %134 = vmatprep.subr.mxu0 0.0
    %135 = vmatpush1.msra.mxu0 0.0
    %136 = vmatprep.subr.mxu0 0.0
    %137 = vmatpush1.msra.mxu0 0.0
    %138 = vmatprep.subr.mxu0 0.0
    %139 = vmatpush1.msra.mxu0 0.0
    %140 = vmatprep.subr.mxu0 0.0
    %141 = vmatpush1.msra.mxu0 0.0
    %142 = vmatprep.subr.mxu0 0.0
    %143 = vmatpush1.msra.mxu0 0.0
    %144 = vmatprep.subr.mxu0 0.0
    %145 = vmatpush1.msra.mxu0 0.0
    %146 = vmatprep.subr.mxu0 0.0
    %147 = vmatpush1.msra.mxu0 0.0
    %148 = vmatprep.subr.mxu0 0.0
    %149 = vmatpush1.msra.mxu0 0.0
    %150 = vmatprep.subr.mxu0 0.0
    %151 = vmatpush1.msra.mxu0 0.0
    %152 = vmatprep.subr.mxu0 0.0
    %153 = vmatpush1.msra.mxu0 0.0
    %154 = vmatprep.subr.mxu0 0.0
    %155 = vmatpush1.msra.mxu0 0.0
    %156 = vmatprep.subr.mxu0 0.0
    %157 = vmatpush1.msra.mxu0 0.0
    %158 = vmatprep.subr.mxu0 0.0
    %159 = vmatpush1.msra.mxu0 0.0
    %160 = vmatprep.subr.mxu0 0.0
    %161 = vmatpush1.msra.mxu0 0.0
    %162 = vmatprep.subr.mxu0 0.0
    %163 = vmatpush1.msra.mxu0 0.0
    %164 = vmatprep.subr.mxu0 0.0
    %165 = vmatpush1.msra.mxu0 0.0
    %166 = vmatprep.subr.mxu0 0.0
    %167 = vmatpush1.msra.mxu0 0.0
    %168 = vmatprep.subr.mxu0 0.0
    %169 = vmatpush1.msra.mxu0 0.0
    %170 = vmatprep.subr.mxu0 0.0
    %171 = vmatpush1.msra.mxu0 0.0
    %172 = vmatprep.subr.mxu0 0.0
    %173 = vmatpush1.msra.mxu0 0.0
    %174 = vmatprep.subr.mxu0 0.0
    %175 = vmatpush1.msra.mxu0 0.0
    %176 = vmatprep.subr.mxu0 0.0
    %177 = vmatpush1.msra.mxu0 0.0
    %178 = vmatprep.mubr.f32.mxu0 0.0
    %179 = vmatmul.mubr.f32.gmra.mrb[0].mxu0 %v109
    %v180 = vpop.f32.mrb[0].mxu0
    %v181 = vadd.f32 %v106, %v180
    %v182 = vpop.f32.mrb[0].mxu0
    %183 = vmatprep.mubr.f32.mxu0 0.0
    %184 = vmatmul.mubr.f32.gmra.mrb[0].mxu0 %v112
    %v185 = vpop.f32.mrb[0].mxu0
    %v186 = vadd.f32 %v106, %v185
    %v187 = vpop.f32.mrb[0].mxu0
    %188 = vdwg.mxu0
    %vm189 = vcmask 785408
    %190 = vst.msk [vmem:[#allocation7] sm:$0xff] %vm189, %v181
    %191 = vst.msk [vmem:[#allocation7 + $0x8] sm:$0xff] %vm189, %v186
    // Predicated region
    $region30: #{tpu_custom_call.1} parent=1 // pred_check
      _
    $region31: #{tpu_custom_call.1} parent=1 // pred_check_branch
      %193 = sbr.rel (0) target = $region33
    $region32: #{tpu_custom_call.1} parent=1 // pred_region
      %s195 = ssub.s32 256, 256
      %196 = vsyncadd [#allocation4], %s195
      %s197 = sshll.u32 [#allocation7], 4
      %s198 = int_to_ptr.vmem [resolvable:$true] %s197
      %203 = dma.vmem_to_hbm [thread:$0]  %s198, 256, %s5, [#allocation4], 128, 128, 8
    $region33: #{tpu_custom_call.1} parent=1 // pred_fallthru
      _
    // Predicated region
    $region34: #{tpu_custom_call.1} parent=1 // pred_check
      _
    $region35: #{tpu_custom_call.1} parent=1 // pred_check_branch
      %205 = sbr.rel (0) target = $region37
    $region36: #{tpu_custom_call.1} parent=1 // pred_region
      %206 = dma.done [#allocation4], 256
    $region37: #{tpu_custom_call.1} parent=1 // pred_fallthru
      _
    %207 = vsyncpa [#allocation3], 1
    %208 = vsyncpa [#allocation6], 1
    %209 = vsyncpa [#allocation4], 1

</llo_original>
